<compile_context>
chip_gen: v7x
topology: tpu7x:2x2x1
jax: 0.10.0
libtpu: 0.0.40
codegen_flags: <defaults>
</compile_context>

<pallas_src>
import functools
from types import SimpleNamespace

import jax
import jax.numpy as jnp
from jax.experimental import pallas as pl
from jax.experimental.pallas import tpu as pltpu


# --------------------------------------------------------------------------
# Pallas kernel: one LSTMCell step over a tile of rows.
# Weight columns are pre-permuted to gate order (i, f, o, g).
# --------------------------------------------------------------------------
def _lstm_cell_kernel(x_ref, h0_ref, c0_ref, w_ref, b_ref, hc_ref):
    D = x_ref.shape[-1]
    H = h0_ref.shape[-1]

    # Two accumulated MXU dots on static slices of the resident weight ref
    # (no lane-axis concatenate; accumulation into the MRF/MRB is free).
    gates = jnp.dot(x_ref[...], w_ref[:D, :],
                    preferred_element_type=jnp.float32)
    gates = gates + jnp.dot(h0_ref[...], w_ref[D:, :],
                            preferred_element_type=jnp.float32)
    gates = gates + b_ref[...]                       # (1, 4H) broadcast, f32

    # Gate order (i, f, o, g): sigmoid on one contiguous 3H slab, tanh on 1H.
    # TODO(synk): if the bundle dump shows sigmoid lowering to 2 EUP pushes,
    #             switch the sigmoid slab to 0.5*tanh(0.5*x)+0.5.
    sig = jax.nn.sigmoid(gates[:, :3 * H])           # (T, 3H)
    g_gate = jnp.tanh(gates[:, 3 * H:])              # (T, H)
    i_gate = sig[:, 0 * H:1 * H]
    f_gate = sig[:, 1 * H:2 * H]
    o_gate = sig[:, 2 * H:3 * H]

    c0 = c0_ref[...]                                 # f32
    c_new = f_gate * c0 + i_gate * g_gate
    h_new = o_gate * jnp.tanh(c_new)

    # Combined output: [0] = h rows, [1] = c rows  (fuses the torch.cat).
    hc_ref[0] = h_new.astype(hc_ref.dtype)
    hc_ref[1] = c_new.astype(hc_ref.dtype)


def _round_up(v, m):
    return ((v + m - 1) // m) * m


def _row_tile(n_rows, tile_n):
    """Row tile: full extent for tiny N, else a sublane-aligned tile capped at
    ~ceil(N/2) so the 'parallel' grid axis has >= 2 steps (v7x megacore)."""
    if n_rows <= 16:
        return n_rows
    return max(8, min(tile_n, _round_up(pl.cdiv(n_rows, 2), 8)))


def _vmem_limit_bytes():
    """Generation-aware scoped-VMEM limit with headroom for compiler scratch."""
    try:
        cap = pltpu.get_tpu_info().vmem_capacity_bytes
    except Exception:
        cap = 64 << 20
    return max(32 << 20, min(cap - (16 << 20), 100 << 20))


def _resident_spec(shape):
    """Constant-index_map (VMEM-resident) spec; single-buffered when supported."""
    idx_map = lambda i: (0,) * len(shape)
    try:
        return pl.BlockSpec(shape, idx_map, pipeline_mode=pl.Buffered(1))
    except TypeError:
        return pl.BlockSpec(shape, idx_map)


def lstm_cell_pallas(x, h0, c0, w_stacked, bias, *, tile_n=512):
    """x: (N, D) bf16; h0: (N, H) bf16; c0: (N, H) f32;
    w_stacked: (D+H, 4H) bf16 (gate order i,f,o,g); bias: (1, 4H) f32.

    Returns hc of shape (2, N, H) f32 with hc[0] = h_new, hc[1] = c_new.
    """
    N, D = x.shape
    H = h0.shape[-1]
    K = D + H
    G = 4 * H

    T = _row_tile(N, tile_n)
    grid_n = pl.cdiv(N, T)

    return pl.pallas_call(
        _lstm_cell_kernel,
        out_shape=jax.ShapeDtypeStruct((2, N, H), c0.dtype),
        grid=(grid_n,),
        in_specs=[
            pl.BlockSpec((T, D), lambda i: (i, 0)),   # x rows   (streamed)
            pl.BlockSpec((T, H), lambda i: (i, 0)),   # h0 rows  (streamed)
            pl.BlockSpec((T, H), lambda i: (i, 0)),   # c0 rows  (streamed)
            _resident_spec((K, G)),                   # weights  (VMEM resident, 1-buf)
            _resident_spec((1, G)),                   # bias     (VMEM resident, 1-buf)
        ],
        out_specs=pl.BlockSpec((2, T, H), lambda i: (0, i, 0)),
        compiler_params=pltpu.CompilerParams(
            dimension_semantics=("parallel",),        # rows independent -> 2 TCs on v7x
            vmem_limit_bytes=_vmem_limit_bytes(),
        ),
    )(x, h0, c0, w_stacked, bias)


# --------------------------------------------------------------------------
# Parameter init (mirrors nn.LSTMCell):
#   weight_ih: (4H, D), weight_hh: (4H, H), bias_ih/bias_hh: (4H,) == 0
#   use_orthogonal=True -> orthogonal init, else xavier_uniform.
# --------------------------------------------------------------------------
def _orthogonal(key, shape):
    rows, cols = shape
    transpose = rows < cols
    r, c = (cols, rows) if transpose else (rows, cols)
    a = jax.random.normal(key, (r, c), dtype=jnp.float32)
    q, rr = jnp.linalg.qr(a)
    q = q * jnp.sign(jnp.diag(rr))[None, :]
    return q.T if transpose else q


def init_lstm_params(key, inputs_dim, outputs_dim, use_orthogonal=True):
    H = outputs_dim
    k_ih, k_hh = jax.random.split(key)
    if use_orthogonal:
        w_ih = _orthogonal(k_ih, (4 * H, inputs_dim))
        w_hh = _orthogonal(k_hh, (4 * H, H))
    else:
        lim_ih = (6.0 / (4 * H + inputs_dim)) ** 0.5
        lim_hh = (6.0 / (4 * H + H)) ** 0.5
        w_ih = jax.random.uniform(k_ih, (4 * H, inputs_dim), jnp.float32,
                                  -lim_ih, lim_ih)
        w_hh = jax.random.uniform(k_hh, (4 * H, H), jnp.float32,
                                  -lim_hh, lim_hh)
    b_ih = jnp.zeros((4 * H,), jnp.float32)
    b_hh = jnp.zeros((4 * H,), jnp.float32)
    return dict(w_ih=w_ih, w_hh=w_hh, b_ih=b_ih, b_hh=b_hh)


def fuse_lstm_params(raw, compute_dtype=jnp.bfloat16):
    """One-time prep: stacked, pre-transposed bf16 weights with gate columns
    permuted (i,f,g,o) -> (i,f,o,g), plus folded f32 bias."""
    H = raw["w_hh"].shape[-1]
    w_stacked = jnp.concatenate([raw["w_ih"].T, raw["w_hh"].T], axis=0)  # (D+H, 4H)
    bias = (raw["b_ih"] + raw["b_hh"])[None, :]                          # (1, 4H)
    perm = jnp.concatenate([jnp.arange(0, 2 * H),        # i, f
                            jnp.arange(3 * H, 4 * H),    # o
                            jnp.arange(2 * H, 3 * H)])   # g
    w_stacked = w_stacked[:, perm].astype(compute_dtype)
    bias = bias[:, perm].astype(jnp.float32)
    return dict(w_stacked=w_stacked, bias=bias)


# --------------------------------------------------------------------------
# Wrapper reproducing LSTMLayer.forward semantics exactly.
# --------------------------------------------------------------------------
def lstm_layer_forward(fused_params, x, h, *, num_P, num_A):
    # Matches torch's h.squeeze(): removes ALL size-1 dims (incl. batch==1).
    h = jnp.squeeze(h)
    n = num_P + num_A
    # torch.split(h, [n, n], dim=-2)
    h0 = jax.lax.slice_in_dim(h, 0, n, axis=-2)
    c0 = jax.lax.slice_in_dim(h, n, 2 * n, axis=-2)

    xshape = x.shape
    hidden_size = xshape[-1]
    batch_input = len(xshape) > 2
    if batch_input:
        batch_size = xshape[0]
        x = x.reshape((-1, hidden_size))
        h0 = h0.reshape((-1, hidden_size))
        c0 = c0.reshape((-1, hidden_size))

    cd = fused_params["w_stacked"].dtype
    hc = lstm_cell_pallas(x.astype(cd), h0.astype(cd), c0.astype(jnp.float32),
                          fused_params["w_stacked"], fused_params["bias"])

    x_out = hc[0]                                        # h_new (N, H), f32
    # (2, N, H) -> (2N, H) is exactly torch.cat((h_new, c_new), dim=0); then unsqueeze(1).
    h_out = hc.reshape((-1, hidden_size))[:, None, :]    # (2N, 1, H)
    if batch_input:
        x_out = x_out.reshape((batch_size, -1, hidden_size))
        h_out = h_out.reshape((batch_size, -1, 1, hidden_size))
    return x_out, h_out


# --------------------------------------------------------------------------
# Pure-JAX references for correctness checks.
# --------------------------------------------------------------------------
def _lstm_cell_ref_f32(x, h0, c0, raw):
    """PyTorch LSTMCell math in f32 (gate order i,f,g,o)."""
    gates = x @ raw["w_ih"].T + raw["b_ih"] + h0 @ raw["w_hh"].T + raw["b_hh"]
    H = h0.shape[-1]
    i = jax.nn.sigmoid(gates[:, :H])
    f = jax.nn.sigmoid(gates[:, H:2 * H])
    g = jnp.tanh(gates[:, 2 * H:3 * H])
    o = jax.nn.sigmoid(gates[:, 3 * H:])
    c_new = f * c0 + i * g
    h_new = o * jnp.tanh(c_new)
    return h_new, c_new


def _lstm_cell_ref_fused(x, h0, c0, fused, D, H):
    """Same dtype path as the kernel (bf16 dots, f32 accum, permuted gates)."""
    cd = fused["w_stacked"].dtype
    xb, hb = x.astype(cd), h0.astype(cd)
    w, b = fused["w_stacked"], fused["bias"]
    gates = (jnp.dot(xb, w[:D], preferred_element_type=jnp.float32)
             + jnp.dot(hb, w[D:], preferred_element_type=jnp.float32) + b)
    i = jax.nn.sigmoid(gates[:, :H])
    f = jax.nn.sigmoid(gates[:, H:2 * H])
    o = jax.nn.sigmoid(gates[:, 2 * H:3 * H])
    g = jnp.tanh(gates[:, 3 * H:])
    c_new = f * c0 + i * g
    h_new = o * jnp.tanh(c_new)
    return h_new, c_new


if __name__ == "__main__":
    # Small, deterministic config consistent with the module's forward.
    args = SimpleNamespace(num_P=2, num_A=2)
    hidden = 32                     # inputs_dim == outputs_dim == hidden
    batch = 2
    n_agents = args.num_P + args.num_A

    key = jax.random.PRNGKey(0)
    k_param, k_x, k_h = jax.random.split(key, 3)

    raw_params = init_lstm_params(k_param, hidden, hidden, use_orthogonal=True)
    fused_params = jax.tree.map(jax.device_put, fuse_lstm_params(raw_params))

    # x: (batch, num_P+num_A, hidden); h: (batch, 2*(num_P+num_A), 1, hidden)
    x = jax.random.normal(k_x, (batch, n_agents, hidden), jnp.float32)
    h = jax.random.normal(k_h, (batch, 2 * n_agents, 1, hidden), jnp.float32)

    fwd = jax.jit(functools.partial(lstm_layer_forward,
                                    num_P=args.num_P, num_A=args.num_A))
    x_out, h_out = fwd(fused_params, x, h)
    jax.block_until_ready((x_out, h_out))

    # ---- correctness checks ------------------------------------------------
    h_sq = jnp.squeeze(h)
    h0_ref = h_sq[:, :n_agents].reshape(-1, hidden)
    c0_ref = h_sq[:, n_agents:].reshape(-1, hidden)
    x_flat = x.reshape(-1, hidden)

    # Tight check: same bf16/f32 dtype path as the kernel.
    h_rf, c_rf = _lstm_cell_ref_fused(x_flat, h0_ref, c0_ref,
                                      fused_params, hidden, hidden)
    x_rf = h_rf.reshape(batch, -1, hidden)
    hcat_rf = jnp.concatenate((h_rf, c_rf), axis=0)[:, None, :].reshape(
        batch, -1, 1, hidden)

    # Loose check: original f32 PyTorch-order math (catches gate-permutation bugs).
    h_r32, c_r32 = _lstm_cell_ref_f32(x_flat, h0_ref, c0_ref, raw_params)
    x_r32 = h_r32.reshape(batch, -1, hidden)
    hcat_r32 = jnp.concatenate((h_r32, c_r32), axis=0)[:, None, :].reshape(
        batch, -1, 1, hidden)

    assert x_out.shape == (batch, n_agents, hidden)
    assert h_out.shape == (batch, 2 * n_agents, 1, hidden)
    assert jnp.allclose(x_out, x_rf, atol=1e-4, rtol=1e-4)
    assert jnp.allclose(h_out, hcat_rf, atol=1e-4, rtol=1e-4)
    assert jnp.allclose(x_out, x_r32, atol=5e-2, rtol=5e-2)
    assert jnp.allclose(h_out, hcat_r32, atol=5e-2, rtol=5e-2)

    print("KERNEL_OK")
</pallas_src>

<mosaic_0001>
module attributes {stable_mosaic.version = 11 : i64} {
  func.func @_lstm_cell_kernel(%arg0: i32, %arg1: memref<8x32xbf16, #tpu.memory_space<vmem>>, %arg2: memref<8x32xbf16, #tpu.memory_space<vmem>>, %arg3: memref<8x32xf32, #tpu.memory_space<vmem>>, %arg4: memref<64x128xbf16, #tpu.memory_space<vmem>>, %arg5: memref<1x128xf32, #tpu.memory_space<vmem>>, %arg6: memref<2x8x32xf32, #tpu.memory_space<vmem>>) attributes {dimension_semantics = [#tpu.dimension_semantics<parallel>], iteration_bounds = array<i64: 1>, scalar_prefetch = 0 : i64, scratch_operands = 0 : i64, tpu.core_type = #tpu.core_type<tc>, window_params = [{transform_indices = @transform_0, window_bounds = array<i64: 8, 32>}, {transform_indices = @transform_1, window_bounds = array<i64: 8, 32>}, {transform_indices = @transform_2, window_bounds = array<i64: 8, 32>}, {pipeline_mode = #tpu.pipeline_mode<synchronous>, transform_indices = @transform_3, window_bounds = array<i64: 64, 128>}, {pipeline_mode = #tpu.pipeline_mode<synchronous>, transform_indices = @transform_4, window_bounds = array<i64: 1, 128>}, {transform_indices = @transform_5, window_bounds = array<i64: 2, 8, 32>}]} {
    %c0 = arith.constant 0 : index
    %c0_0 = arith.constant 0 : index
    %0 = vector.load %arg1[%c0, %c0_0] : memref<8x32xbf16, #tpu.memory_space<vmem>>, vector<8x32xbf16>
    %c0_1 = arith.constant 0 : index
    %c0_2 = arith.constant 0 : index
    %1 = vector.load %arg4[%c0_1, %c0_2] : memref<64x128xbf16, #tpu.memory_space<vmem>>, vector<32x128xbf16>
    %cst = arith.constant dense<0.000000e+00> : vector<8x128xf32>
    %2 = tpu.matmul %0, %1, %cst {dimension_numbers = #tpu.dot_dimension_numbers<[1], [0], [0], [1], [0, 0, 1, 1], [], []>} : vector<8x32xbf16>, vector<32x128xbf16>, vector<8x128xf32> -> vector<8x128xf32>
    %c0_3 = arith.constant 0 : index
    %c0_4 = arith.constant 0 : index
    %3 = vector.load %arg2[%c0_3, %c0_4] : memref<8x32xbf16, #tpu.memory_space<vmem>>, vector<8x32xbf16>
    %c32 = arith.constant 32 : index
    %c0_5 = arith.constant 0 : index
    %4 = vector.load %arg4[%c32, %c0_5] : memref<64x128xbf16, #tpu.memory_space<vmem>>, vector<32x128xbf16>
    %cst_6 = arith.constant dense<0.000000e+00> : vector<8x128xf32>
    %5 = tpu.matmul %3, %4, %cst_6 {dimension_numbers = #tpu.dot_dimension_numbers<[1], [0], [0], [1], [0, 0, 1, 1], [], []>} : vector<8x32xbf16>, vector<32x128xbf16>, vector<8x128xf32> -> vector<8x128xf32>
    %6 = arith.addf %2, %5 : vector<8x128xf32>
    %c0_7 = arith.constant 0 : index
    %c0_8 = arith.constant 0 : index
    %7 = vector.load %arg5[%c0_7, %c0_8] : memref<1x128xf32, #tpu.memory_space<vmem>>, vector<1x128xf32>
    %8 = vector.broadcast %7 : vector<1x128xf32> to vector<8x128xf32>
    %9 = arith.addf %6, %8 : vector<8x128xf32>
    %10 = vector.extract_strided_slice %9 {offsets = [0, 0], sizes = [8, 96], strides = [1, 1]} : vector<8x128xf32> to vector<8x96xf32>
    %11 = arith.negf %10 : vector<8x96xf32>
    %12 = math.exp %11 : vector<8x96xf32>
    %cst_9 = arith.constant 1.000000e+00 : f32
    %13 = vector.broadcast %cst_9 : f32 to vector<8x96xf32>
    %14 = arith.addf %13, %12 : vector<8x96xf32>
    %15 = arith.divf %13, %14 : vector<8x96xf32>
    %16 = vector.extract_strided_slice %9 {offsets = [0, 96], sizes = [8, 32], strides = [1, 1]} : vector<8x128xf32> to vector<8x32xf32>
    %17 = math.tanh %16 : vector<8x32xf32>
    %18 = vector.extract_strided_slice %15 {offsets = [0, 0], sizes = [8, 32], strides = [1, 1]} : vector<8x96xf32> to vector<8x32xf32>
    %19 = vector.extract_strided_slice %15 {offsets = [0, 32], sizes = [8, 32], strides = [1, 1]} : vector<8x96xf32> to vector<8x32xf32>
    %20 = vector.extract_strided_slice %15 {offsets = [0, 64], sizes = [8, 32], strides = [1, 1]} : vector<8x96xf32> to vector<8x32xf32>
    %c0_10 = arith.constant 0 : index
    %c0_11 = arith.constant 0 : index
    %21 = vector.load %arg3[%c0_10, %c0_11] : memref<8x32xf32, #tpu.memory_space<vmem>>, vector<8x32xf32>
    %22 = arith.mulf %19, %21 : vector<8x32xf32>
    %23 = arith.mulf %18, %17 : vector<8x32xf32>
    %24 = arith.addf %22, %23 : vector<8x32xf32>
    %25 = math.tanh %24 : vector<8x32xf32>
    %26 = arith.mulf %20, %25 : vector<8x32xf32>
    %c0_12 = arith.constant 0 : index
    %c0_13 = arith.constant 0 : index
    %c0_14 = arith.constant 0 : index
    %27 = vector.load %arg6[%c0_12, %c0_13, %c0_14] : memref<2x8x32xf32, #tpu.memory_space<vmem>>, vector<1x8x32xf32>
    %28 = vector.shape_cast %27 : vector<1x8x32xf32> to vector<8x32xf32>
    %29 = vector.shape_cast %26 : vector<8x32xf32> to vector<1x8x32xf32>
    tpu.vector_store %arg6[%c0_12, %c0_13, %c0_14], %29 {strides = array<i32>} : memref<2x8x32xf32, #tpu.memory_space<vmem>>, vector<1x8x32xf32>,
    %c1 = arith.constant 1 : index
    %c0_15 = arith.constant 0 : index
    %c0_16 = arith.constant 0 : index
    %30 = vector.load %arg6[%c1, %c0_15, %c0_16] : memref<2x8x32xf32, #tpu.memory_space<vmem>>, vector<1x8x32xf32>
    %31 = vector.shape_cast %30 : vector<1x8x32xf32> to vector<8x32xf32>
    %32 = vector.shape_cast %24 : vector<8x32xf32> to vector<1x8x32xf32>
    tpu.vector_store %arg6[%c1, %c0_15, %c0_16], %32 {strides = array<i32>} : memref<2x8x32xf32, #tpu.memory_space<vmem>>, vector<1x8x32xf32>,
    return
  }
  func.func @transform_0(%arg0: i32) -> (i32, i32) {
    %c0_i32 = arith.constant 0 : i32
    %c0_i32_0 = arith.constant 0 : i32
    return %arg0, %c0_i32 : i32, i32
  }
  func.func @transform_1(%arg0: i32) -> (i32, i32) {
    %c0_i32 = arith.constant 0 : i32
    %c0_i32_0 = arith.constant 0 : i32
    return %arg0, %c0_i32 : i32, i32
  }
  func.func @transform_2(%arg0: i32) -> (i32, i32) {
    %c0_i32 = arith.constant 0 : i32
    %c0_i32_0 = arith.constant 0 : i32
    return %arg0, %c0_i32 : i32, i32
  }
  func.func @transform_3(%arg0: i32) -> (i32, i32) {
    %c0_i32 = arith.constant 0 : i32
    %c0_i32_0 = arith.constant 0 : i32
    %c0_i32_1 = arith.constant 0 : i32
    return %c0_i32, %c0_i32_0 : i32, i32
  }
  func.func @transform_4(%arg0: i32) -> (i32, i32) {
    %c0_i32 = arith.constant 0 : i32
    %c0_i32_0 = arith.constant 0 : i32
    %c0_i32_1 = arith.constant 0 : i32
    return %c0_i32, %c0_i32_0 : i32, i32
  }
  func.func @transform_5(%arg0: i32) -> (i32, i32, i32) {
    %c0_i32 = arith.constant 0 : i32
    %c0_i32_0 = arith.constant 0 : i32
    %c0_i32_1 = arith.constant 0 : i32
    return %c0_i32, %arg0, %c0_i32_0 : i32, i32, i32
  }
}

</mosaic_0001>

<llo_original>
// kernel: lstm_layer_forward.1
$region0: #{lstm_layer_forward.1}
  #allocation0 [shape = 'u32[]', space=smem, size = 0x4, offset = 0x4, fixed_abs, tag = 'smem constant byte address 0x4 - core index']
  #allocation1 [shape = 'u32[144,128]{1,0:T(1,128)}', space=vmem, size = 0x12000, scoped, tag = 'internal scratch']
  %s0 = inlined_call_operand.vmem [shape: bf16[8,32], index: 0, kind: input, shape index: {}]
  %s1 = inlined_call_operand.vmem [shape: bf16[8,32], index: 1, kind: input, shape index: {}]
  %s2 = inlined_call_operand.vmem [shape: f32[8,32], index: 2, kind: input, shape index: {}]
  %s3 = inlined_call_operand.vmem [shape: bf16[64,128], index: 3, kind: input, shape index: {}]
  %s4 = inlined_call_operand.vmem [shape: f32[1,128], index: 4, kind: input, shape index: {}]
  %s5 = inlined_call_operand.vmem [shape: f32[2,8,32], index: 5, kind: output, shape index: {}]
  %s6 = sld [smem:[#allocation0]]
  $region30: #{lstm_layer_forward.1} parent=0
    _
  %s8 = ssub.s32 1, %s6
  %s9 = scalar_select 0, %s8, %s6
  // Predicated region
  $region2: #{lstm_layer_forward.1} parent=0 // pred_check
    _
  $region3: #{lstm_layer_forward.1} parent=0 // pred_check_branch
    %11 = sbr.rel (0) target = $region5
  $region4: #{lstm_layer_forward.1} parent=0 // pred_region
    _
  $region5: #{lstm_layer_forward.1} parent=0 // pred_fallthru
    _
  // Predicated region
  $region6: #{lstm_layer_forward.1} parent=0 // pred_check
    _
  $region7: #{lstm_layer_forward.1} parent=0 // pred_check_branch
    %13 = sbr.rel (0) target = $region9
  $region8: #{lstm_layer_forward.1} parent=0 // pred_region
    _
  $region9: #{lstm_layer_forward.1} parent=0 // pred_fallthru
    _
  // Predicated region
  $region10: #{lstm_layer_forward.1} parent=0 // pred_check
    _
  $region11: #{lstm_layer_forward.1} parent=0 // pred_check_branch
    %15 = sbr.rel (0) target = $region13
  $region12: #{lstm_layer_forward.1} parent=0 // pred_region
    _
  $region13: #{lstm_layer_forward.1} parent=0 // pred_fallthru
    _
  // Predicated region
  $region14: #{lstm_layer_forward.1} parent=0 // pred_check
    _
  $region15: #{lstm_layer_forward.1} parent=0 // pred_check_branch
    %17 = sbr.rel (0) target = $region17
  $region16: #{lstm_layer_forward.1} parent=0 // pred_region
    _
  $region17: #{lstm_layer_forward.1} parent=0 // pred_fallthru
    _
  // Predicated region
  $region18: #{lstm_layer_forward.1} parent=0 // pred_check
    _
  $region19: #{lstm_layer_forward.1} parent=0 // pred_check_branch
    %19 = sbr.rel (0) target = $region21
  $region20: #{lstm_layer_forward.1} parent=0 // pred_region
    _
  $region21: #{lstm_layer_forward.1} parent=0 // pred_fallthru
    _
  %v21 = vld [vmem:[%s0] sm:$0xf]
  %v22 = vld [vmem:[%s3] sm:$0xf]
  %v23 = vld [vmem:[%s3 + $0x4] sm:$0xf]
  %v24 = vld [vmem:[%s3 + $0x8] sm:$0xf]
  %v25 = vld [vmem:[%s3 + $0xc] sm:$0xf]
  %v26 = vld [vmem:[%s1] sm:$0xf]
  %v27 = vld [vmem:[%s3 + $0x10] sm:$0xf]
  %v28 = vld [vmem:[%s3 + $0x14] sm:$0xf]
  %v29 = vld [vmem:[%s3 + $0x18] sm:$0xf]
  %v30 = vld [vmem:[%s3 + $0x1c] sm:$0xf]
  %v35 = vunpack.c.l.b16 %v27
  %v36 = vunpack.c.l.b16 %v28
  %v37 = vunpack.c.l.b16 %v29
  %v38 = vunpack.c.l.b16 %v30
  %v39 = vpack.c.b16 %v36, %v35
  %v40 = vpack.c.b16 %v38, %v37
  %vm43 = vcmask 261120
  %v45 = vsel %vm43, %v26, 0
  %47 = vmatprep.subr.bf16.mxu0 0
  %48 = vmatpush1.bf16.msra.mxu0 %v39
  %49 = vmatprep.subr.bf16.mxu0 0
  %50 = vmatpush1.bf16.msra.mxu0 %v40
  %51 = vmatprep.subr.bf16.mxu0 0
  %52 = vmatpush1.bf16.msra.mxu0 0
  %53 = vmatprep.subr.bf16.mxu0 0
  %54 = vmatpush1.bf16.msra.mxu0 0
  %55 = vmatprep.subr.bf16.mxu0 0
  %56 = vmatpush1.bf16.msra.mxu0 0
  %57 = vmatprep.subr.bf16.mxu0 0
  %58 = vmatpush1.bf16.msra.mxu0 0
  %59 = vmatprep.subr.bf16.mxu0 0
  %60 = vmatpush1.bf16.msra.mxu0 0
  %61 = vmatprep.subr.bf16.mxu0 0
  %62 = vmatpush1.bf16.msra.mxu0 0
  %63 = vmatprep.subr.bf16.mxu0 0
  %64 = vmatpush1.bf16.msra.mxu0 0
  %65 = vmatprep.subr.bf16.mxu0 0
  %66 = vmatpush1.bf16.msra.mxu0 0
  %67 = vmatprep.subr.bf16.mxu0 0
  %68 = vmatpush1.bf16.msra.mxu0 0
  %69 = vmatprep.subr.bf16.mxu0 0
  %70 = vmatpush1.bf16.msra.mxu0 0
  %71 = vmatprep.subr.bf16.mxu0 0
  %72 = vmatpush1.bf16.msra.mxu0 0
  %73 = vmatprep.subr.bf16.mxu0 0
  %74 = vmatpush1.bf16.msra.mxu0 0
  %75 = vmatprep.subr.bf16.mxu0 0
  %76 = vmatpush1.bf16.msra.mxu0 0
  %77 = vmatprep.subr.bf16.mxu0 0
  %78 = vmatpush1.bf16.msra.mxu0 0
  %79 = vmatprep.mubr.bf16.mxu0 0
  %80 = vmatmul.mubr.bf16.gmra.mrb[0].mxu0 %v45
  %v81 = vpop.f32.mrb[0].mxu0
  %v82 = vadd.f32 0.0, %v81
  %v83 = vpop.f32.mrb[0].mxu0
  %v84 = vpop.f32.mrb[0].mxu0
  %v85 = vpop.f32.mrb[0].mxu0
  %86 = vdwg.mxu0
  %v91 = vunpack.c.l.b16 %v22
  %v92 = vunpack.c.l.b16 %v23
  %v93 = vunpack.c.l.b16 %v24
  %v94 = vunpack.c.l.b16 %v25
  %v95 = vpack.c.b16 %v92, %v91
  %v96 = vpack.c.b16 %v94, %v93
  %v100 = vsel %vm43, %v21, 0
  %102 = vmatprep.subr.bf16.mxu0 0
  %103 = vmatpush1.bf16.msra.mxu0 %v95
  %104 = vmatprep.subr.bf16.mxu0 0
  %105 = vmatpush1.bf16.msra.mxu0 %v96
  %106 = vmatprep.subr.bf16.mxu0 0
  %107 = vmatpush1.bf16.msra.mxu0 0
  %108 = vmatprep.subr.bf16.mxu0 0
  %109 = vmatpush1.bf16.msra.mxu0 0
  %110 = vmatprep.subr.bf16.mxu0 0
  %111 = vmatpush1.bf16.msra.mxu0 0
  %112 = vmatprep.subr.bf16.mxu0 0
  %113 = vmatpush1.bf16.msra.mxu0 0
  %114 = vmatprep.subr.bf16.mxu0 0
  %115 = vmatpush1.bf16.msra.mxu0 0
  %116 = vmatprep.subr.bf16.mxu0 0
  %117 = vmatpush1.bf16.msra.mxu0 0
  %118 = vmatprep.subr.bf16.mxu0 0
  %119 = vmatpush1.bf16.msra.mxu0 0
  %120 = vmatprep.subr.bf16.mxu0 0
  %121 = vmatpush1.bf16.msra.mxu0 0
  %122 = vmatprep.subr.bf16.mxu0 0
  %123 = vmatpush1.bf16.msra.mxu0 0
  %124 = vmatprep.subr.bf16.mxu0 0
  %125 = vmatpush1.bf16.msra.mxu0 0
  %126 = vmatprep.subr.bf16.mxu0 0
  %127 = vmatpush1.bf16.msra.mxu0 0
  %128 = vmatprep.subr.bf16.mxu0 0
  %129 = vmatpush1.bf16.msra.mxu0 0
  %130 = vmatprep.subr.bf16.mxu0 0
  %131 = vmatpush1.bf16.msra.mxu0 0
  %132 = vmatprep.subr.bf16.mxu0 0
  %133 = vmatpush1.bf16.msra.mxu0 0
  %134 = vmatprep.mubr.bf16.mxu0 0
  %135 = vmatmul.mubr.bf16.gmra.mrb[0].mxu0 %v100
  %v136 = vpop.f32.mrb[0].mxu0
  %v137 = vadd.f32 %v82, %v136
  %v138 = vpop.f32.mrb[0].mxu0
  %v139 = vpop.f32.mrb[0].mxu0
  %v140 = vpop.f32.mrb[0].mxu0
  %141 = vdwg.mxu0
  %v142 = vld [vmem:[%s4] sm:$0x1]
  %v144 = vlaneseq
  %v145 = vshrl.u32 %v144, 7
  %v146 = vsub.s32 0, %v145
  %v147 = vrot.slane %v142, %v146
  %v149 = vadd.f32 %v137, %v147
  %v150 = vxor.u32 %v149, 2147483648
  %v151 = vmul.f32 %v150, 1.442695
  %v152 = vpow.pop %v151
  %v153 = vadd.f32 %v152, 1.0
  %v154 = vrcp.pop %v153
  %v155 = vmul.f32 1.0, %v154
  %v156 = vtanh.pop %v149
  %v157 = vld [vmem:[%s2] sm:$0xff]
  %159 = vrot.lane.b32.xlu0 %v157, 32
  %v160 = vpop.permute.xlu0 %159
  %v162 = vmul.f32 %v155, %v160
  %164 = vrot.lane.b32.xlu0 %v156, 32
  %v165 = vpop.permute.xlu0 %164
  %v167 = vmul.f32 %v155, %v165
  %169 = vrot.lane.b32.xlu0 %v167, 32
  %v170 = vpop.permute.xlu0 %169
  %v172 = vadd.f32 %v162, %v170
  %v173 = vtanh.pop %v172
  %175 = vrot.lane.b32.xlu0 %v173, 32
  %v176 = vpop.permute.xlu0 %175
  %v178 = vmul.f32 %v155, %v176
  %180 = vrot.lane.b32.xlu0 %v178, 64
  %v181 = vpop.permute.xlu0 %180
  %183 = vst.msk [vmem:[%s5] sm:$0xff] %vm43, %v181
  %185 = vrot.lane.b32.xlu0 %v172, 96
  %v186 = vpop.permute.xlu0 %185
  %s188 = scalar_lea.vmem %s5, 8
  %189 = vst.msk [vmem:[%s188] sm:$0xff] %vm43, %v186
  // Predicated region
  $region22: #{lstm_layer_forward.1} parent=0 // pred_check
    _
  $region23: #{lstm_layer_forward.1} parent=0 // pred_check_branch
    %191 = sbr.rel (0) target = $region25
  $region24: #{lstm_layer_forward.1} parent=0 // pred_region
    _
  $region25: #{lstm_layer_forward.1} parent=0 // pred_fallthru
    _
  // Predicated region
  $region26: #{lstm_layer_forward.1} parent=0 // pred_check
    _
  $region27: #{lstm_layer_forward.1} parent=0 // pred_check_branch
    %193 = sbr.rel (0) target = $region29
  $region28: #{lstm_layer_forward.1} parent=0 // pred_region
    _
  $region29: #{lstm_layer_forward.1} parent=0 // pred_fallthru
    _

</llo_original>
